<compile_context>
chip_gen: v7x
topology: tpu7x:2x2x1
jax: 0.10.0
libtpu: 0.0.40
codegen_flags: <defaults>
</compile_context>

<pallas_src>
import functools

import jax
import jax.numpy as jnp
from jax.experimental import pallas as pl
from jax.experimental.pallas import tpu as pltpu

# Explicit scoped-VMEM limit (>= the 16/32 MiB defaults, well under physical).
_VMEM_LIMIT = 32 * 1024 * 1024


# ----------------------------------------------------------------------------
# Pallas kernels
# ----------------------------------------------------------------------------
def _conv_in_lrelu_kernel(p_ref, w_ref, o_ref, *, num_phases, cout,
                          batch_tile, pos, use_norm, use_act):
    """One batch tile: single fused MXU matmul + InstanceNorm + LeakyReLU.

    p_ref: (1, K, L)    im2col patches; K = Cin*kh*kw, L = batch_tile * pos
                        (lane axis, batch-major: lane = b*pos + p)
    w_ref: (F*C, K)     dense 2-D weights, phase-major / channel-minor rows
                        (F = 1 for Conv2d, F = 4 sub-pixel phases for ConvT)
    o_ref: (1, F*C, L)  lane-dense, NCHW-compatible output slab
    """
    x = p_ref[0]                                                # (K, L)
    # One MXU push for all phases/channels (was F separate 4-8 row matmuls).
    y = jnp.dot(w_ref[...], x, preferred_element_type=jnp.float32)  # (F*C, L) f32

    F, C, B, P = num_phases, cout, batch_tile, pos
    if use_norm or use_act:
        slabs = []
        for b in range(B):                      # static unroll over samples
            yb = y[:, b * P:(b + 1) * P] if B > 1 else y        # (F*C, P)
            if use_norm:
                # InstanceNorm2d (no affine, eps=1e-5, biased variance):
                # per-(n, c) stats over all F*P output positions, one pass via
                # sum / sumsq in f32 (stats grouped by channel across phases).
                inv_cnt = 1.0 / float(F * P)
                s1 = 0.0
                s2 = 0.0
                for f in range(F):
                    blk = yb[f * C:(f + 1) * C, :] if F > 1 else yb
                    s1 = s1 + jnp.sum(blk, axis=1, keepdims=True)
                    s2 = s2 + jnp.sum(blk * blk, axis=1, keepdims=True)
                mean = s1 * inv_cnt                             # (C, 1)
                var = jnp.maximum(s2 * inv_cnt - mean * mean, 0.0)
                scale = jax.lax.rsqrt(var + 1e-5)               # EUP (free slot)
                if F > 1:                                       # expand to rows
                    mean = jnp.concatenate([mean] * F, axis=0)  # (F*C, 1)
                    scale = jnp.concatenate([scale] * F, axis=0)
                yb = (yb - mean) * scale
            if use_act:
                yb = jnp.maximum(yb, 0.01 * yb)  # LeakyReLU(0.01): mul + max
            slabs.append(yb)
        y = jnp.concatenate(slabs, axis=1) if B > 1 else slabs[0]

    o_ref[0] = y.astype(o_ref.dtype)            # single full-width store


def _pick_batch_tile(n, pos):
    """Fold enough samples onto the lane axis to reach >=128 lanes (capped at n)."""
    t = max(1, min(n, -(-128 // pos)))
    while n % t:
        t -= 1
    return t


def conv_matmul_layer(patches, w2d, *, num_phases, use_norm, use_act,
                      mxu_dtype=jnp.float32):
    """patches: (N, K, P) f32, w2d: (F*Cout, K) f32 -> (N, F, Cout, P) f32."""
    N, K, P = patches.shape
    FC, K2 = w2d.shape
    assert K == K2 and FC % num_phases == 0
    cout = FC // num_phases
    bt = _pick_batch_tile(N, P)
    NB, L = N // bt, bt * P

    # Fold `bt` samples onto the lane axis (lane = b*P + p): lane-dense stores,
    # fewer grid steps.  This transpose fuses into the im2col materialisation.
    p = patches.reshape(NB, bt, K, P).transpose(0, 2, 1, 3).reshape(NB, K, L)
    p = p.astype(mxu_dtype)
    w = w2d.astype(mxu_dtype)

    kernel = functools.partial(
        _conv_in_lrelu_kernel, num_phases=num_phases, cout=cout,
        batch_tile=bt, pos=P, use_norm=use_norm, use_act=use_act)

    elt = jnp.dtype(mxu_dtype).itemsize
    flops = 2 * N * FC * K * P
    bytes_acc = elt * (N * K * P + FC * K) + 4 * N * FC * P

    out = pl.pallas_call(
        kernel,
        out_shape=jax.ShapeDtypeStruct((NB, FC, L), jnp.float32),
        grid=(NB,),
        in_specs=[
            pl.BlockSpec((1, K, L), lambda g: (g, 0, 0)),
            pl.BlockSpec((FC, K), lambda g: (0, 0)),
        ],
        out_specs=pl.BlockSpec((1, FC, L), lambda g: (g, 0, 0)),
        compiler_params=pltpu.CompilerParams(
            dimension_semantics=("parallel",),
            vmem_limit_bytes=_VMEM_LIMIT),
        cost_estimate=pl.CostEstimate(flops=flops, transcendentals=0,
                                      bytes_accessed=bytes_acc),
    )(p, w)

    # Un-fold to per-sample, NCHW-contiguous (N, F, C, P).  When bt == 1
    # (production case, P >= 128) the transpose is a no-op view.
    out = out.reshape(NB, num_phases, cout, bt, P)
    out = jnp.transpose(out, (0, 3, 1, 2, 4)).reshape(N, num_phases, cout, P)
    return out


def _bottleneck_kernel(x_ref, wb_ref, wd_ref, o_ref):
    """Fused Flatten -> Linear(feats, latent) -> Linear(latent, feats); z stays on-chip."""
    z = jnp.dot(x_ref[...], wb_ref[...], preferred_element_type=jnp.float32)
    o_ref[...] = jnp.dot(z, wd_ref[...],
                         preferred_element_type=jnp.float32).astype(o_ref.dtype)


def bottleneck_decoder_input(flat, wb_t, wd_t):
    """flat: (N, feats), wb_t: (feats, latent), wd_t: (latent, feats)."""
    # TODO(synk): for large batches, tile M into >=8-row blocks on a
    # dimension_semantics=("parallel",) grid so both v7x TensorCores are used.
    N, feats = flat.shape
    latent = wb_t.shape[1]
    flops = 2 * N * latent * (feats + wd_t.shape[1])
    bytes_acc = 4 * (N * feats + feats * latent + latent * wd_t.shape[1]
                     + N * wd_t.shape[1])
    return pl.pallas_call(
        _bottleneck_kernel,
        out_shape=jax.ShapeDtypeStruct((N, wd_t.shape[1]), jnp.float32),
        compiler_params=pltpu.CompilerParams(vmem_limit_bytes=_VMEM_LIMIT),
        cost_estimate=pl.CostEstimate(flops=flops, transcendentals=0,
                                      bytes_accessed=bytes_acc),
    )(flat, wb_t, wd_t)


# ----------------------------------------------------------------------------
# Glue: im2col / weight preprocessing / sub-pixel merge (plain JAX)
# ----------------------------------------------------------------------------
def im2col_kp(x, kh, kw, stride, pad):
    """x: (N, C, H, W) -> patches (N, C*kh*kw, Ho*Wo), K index = c*kh*kw+i*kw+j."""
    N, C, H, W = x.shape
    xp = jnp.pad(x, ((0, 0), (0, 0), (pad, pad), (pad, pad)))
    Ho = (H + 2 * pad - kh) // stride + 1
    Wo = (W + 2 * pad - kw) // stride + 1
    slabs = []
    for i in range(kh):
        for j in range(kw):
            slabs.append(xp[:, :, i:i + stride * Ho:stride,
                            j:j + stride * Wo:stride])          # (N, C, Ho, Wo)
    p = jnp.stack(slabs, axis=2)                                # (N, C, kh*kw, Ho, Wo)
    return p.reshape(N, C * kh * kw, Ho * Wo), Ho, Wo


def convtranspose_phase_weights(w):
    """ConvTranspose2d(k=4, s=2, p=1) weight (Cin, Cout, 4, 4) -> dense 2-D
    (4*Cout, Cin*9): 4 sub-pixel stride-1 3x3 filters, phase-major rows.

    Output phase (a, b) equals a stride-1 3x3 conv of the (pad=1) input with
    taps  row r: a=0 -> {r=0: w-row 3, r=1: w-row 1}
               a=1 -> {r=1: w-row 2, r=2: w-row 0}   (same for columns).
    Unused taps are zero.  (Dropping them -- K=Cin*4 per phase -- would undo
    the single fused matmul, so it is only worth it when MXU-bound.)
    """
    Cin, Cout, kh, kw = w.shape
    assert kh == 4 and kw == 4
    kmap = {(0, 0): 3, (0, 1): 1, (1, 1): 2, (1, 2): 0}
    W3 = jnp.zeros((4, Cout, Cin, 3, 3), w.dtype)
    for a in range(2):
        for b in range(2):
            ph = a * 2 + b
            for r in range(3):
                if (a, r) not in kmap:
                    continue
                for s in range(3):
                    if (b, s) not in kmap:
                        continue
                    W3 = W3.at[ph, :, :, r, s].set(
                        w[:, :, kmap[(a, r)], kmap[(b, s)]].T)
    return W3.reshape(4 * Cout, Cin * 9)


def phase_merge(y, cout, H, W):
    """y: (N, 4, Cout, H*W) sub-pixel phases -> (N, Cout, 2H, 2W)."""
    N = y.shape[0]
    y6 = y.reshape(N, 2, 2, cout, H, W)            # (n, a, b, o, i, j)
    y6 = jnp.transpose(y6, (0, 3, 4, 1, 5, 2))     # (n, o, i, a, j, b)
    return y6.reshape(N, cout, 2 * H, 2 * W)


# ----------------------------------------------------------------------------
# AE forward (Pallas)
# ----------------------------------------------------------------------------
def ae_forward(inp, params, hidden_dims, inter_res, mxu_dtype=jnp.float32):
    N = inp.shape[0]

    # --- encoder: Conv2d(k=3, s=2, p=1, bias=False) + InstanceNorm + LeakyReLU
    h = inp
    for w in params["enc"]:                       # w: (Cout, Cin, 3, 3)
        Cout, Cin, kh, kw = w.shape
        # TODO(synk): build these patches in-kernel from a padded NCHW VMEM
        # block (strided slices) to avoid the 9x patch-tensor HBM round-trip.
        patches, Ho, Wo = im2col_kp(h, kh, kw, stride=2, pad=1)
        w2d = w.reshape(Cout, Cin * kh * kw)                     # (Cout, K)
        y = conv_matmul_layer(patches, w2d, num_phases=1,
                              use_norm=True, use_act=True, mxu_dtype=mxu_dtype)
        h = y.reshape(N, Cout, Ho, Wo)                           # NCHW-contiguous

    # --- bottleneck + decoder_input (fused, bias-free Linears)
    flat = h.reshape(N, -1)                                      # NCHW flatten order
    d = bottleneck_decoder_input(flat,
                                 params["w_bottleneck"].T,
                                 params["w_decoder_input"].T)    # (N, feats)
    h = d.reshape(N, hidden_dims[-1], inter_res, inter_res)

    # --- decoder: ConvTranspose2d(k=4, s=2, p=1, bias=False) [+ IN + LeakyReLU]
    # Lowered as 4 sub-pixel stride-1 3x3 convs sharing one im2col (no zero
    # upsampling), fused into a single matmul, then a small depth-to-space.
    for idx, w in enumerate(params["dec"]):       # w: (Cin, Cout, 4, 4)
        is_last = idx == len(params["dec"]) - 1
        Cin, Cout = w.shape[0], w.shape[1]
        H, W = h.shape[2], h.shape[3]
        patches, _, _ = im2col_kp(h, 3, 3, stride=1, pad=1)      # (N, Cin*9, H*W)
        w2d = convtranspose_phase_weights(w)                     # (4*Cout, Cin*9)
        y = conv_matmul_layer(patches, w2d, num_phases=4,
                              use_norm=not is_last, use_act=not is_last,
                              mxu_dtype=mxu_dtype)               # (N, 4, Cout, H*W)
        # TODO(synk): weave this depth-to-space inside the kernel (or have the
        # next layer's in-kernel im2col consume the phase layout directly).
        h = phase_merge(y, Cout, H, W)                           # (N, Cout, 2H, 2W)
    return h


# ----------------------------------------------------------------------------
# Pure-JAX reference (for sanity checking the Pallas path)
# ----------------------------------------------------------------------------
def ae_forward_ref(inp, params, hidden_dims, inter_res):
    def inorm(x):
        m = jnp.mean(x, axis=(2, 3), keepdims=True)
        v = jnp.mean((x - m) ** 2, axis=(2, 3), keepdims=True)
        return (x - m) * jax.lax.rsqrt(v + 1e-5)

    def lrelu(x):
        return jnp.where(x >= 0, x, 0.01 * x)

    h = inp
    for w in params["enc"]:
        h = jax.lax.conv_general_dilated(
            h, w, (2, 2), [(1, 1), (1, 1)],
            dimension_numbers=("NCHW", "OIHW", "NCHW"))
        h = lrelu(inorm(h))
    N = h.shape[0]
    z = h.reshape(N, -1) @ params["w_bottleneck"].T
    d = z @ params["w_decoder_input"].T
    h = d.reshape(N, hidden_dims[-1], inter_res, inter_res)
    for idx, w in enumerate(params["dec"]):
        is_last = idx == len(params["dec"]) - 1
        kh = w.shape[2]
        w_eq = jnp.transpose(w[:, :, ::-1, ::-1], (1, 0, 2, 3))
        h = jax.lax.conv_general_dilated(
            h, w_eq, (1, 1), [(kh - 2, kh - 2)] * 2,
            lhs_dilation=(2, 2),
            dimension_numbers=("NCHW", "OIHW", "NCHW"))
        if not is_last:
            h = lrelu(inorm(h))
    return h


# ----------------------------------------------------------------------------
# Main
# ----------------------------------------------------------------------------
if __name__ == "__main__":
    # Small synthetic config (mirrors AE.__init__): in_channels=1, out=1.
    batch = 2
    image_size = 16
    hidden_dims = [4, 8]
    latent_dim = 32
    inter_res = image_size // (2 ** len(hidden_dims))           # 4
    inter_feats = inter_res * inter_res * hidden_dims[-1]       # 128

    key = jax.random.PRNGKey(0)
    k_in, k0, k1, kb, kd, kt1, kt0 = jax.random.split(key, 7)

    params = {
        "enc": [
            0.1 * jax.random.normal(k0, (hidden_dims[0], 1, 3, 3), jnp.float32),
            0.1 * jax.random.normal(k1, (hidden_dims[1], hidden_dims[0], 3, 3),
                                    jnp.float32),
        ],
        # nn.Linear weight layout: (out_features, in_features)
        "w_bottleneck": 0.1 * jax.random.normal(kb, (latent_dim, inter_feats),
                                                jnp.float32),
        "w_decoder_input": 0.1 * jax.random.normal(kd, (inter_feats, latent_dim),
                                                   jnp.float32),
        # nn.ConvTranspose2d weight layout: (Cin, Cout, kh, kw)
        "dec": [
            0.1 * jax.random.normal(kt1, (hidden_dims[1], hidden_dims[0], 4, 4),
                                    jnp.float32),
            0.1 * jax.random.normal(kt0, (hidden_dims[0], 1, 4, 4), jnp.float32),
        ],
    }

    inp = jax.random.normal(k_in, (batch, 1, image_size, image_size), jnp.float32)

    # f32 path: strict check against the pure-JAX reference.
    rec = jax.block_until_ready(
        ae_forward(inp, params, hidden_dims, inter_res))
    ref = jax.block_until_ready(
        ae_forward_ref(inp, params, hidden_dims, inter_res))

    assert rec.shape == (batch, 1, image_size, image_size), rec.shape
    assert jnp.all(jnp.isfinite(rec))
    assert jnp.allclose(rec, ref, atol=1e-4, rtol=1e-4), \
        float(jnp.max(jnp.abs(rec - ref)))

    # bf16 MXU-input path (v6e/v7x production setting): halves patch/weight HBM
    # traffic & VMEM; IN/LeakyReLU and accumulation stay f32.  Loose bound only.
    rec_bf16 = jax.block_until_ready(
        ae_forward(inp, params, hidden_dims, inter_res, mxu_dtype=jnp.bfloat16))
    assert rec_bf16.shape == rec.shape
    assert jnp.all(jnp.isfinite(rec_bf16))
    assert float(jnp.max(jnp.abs(rec_bf16 - ref))) < 0.25

    print("KERNEL_OK")
</pallas_src>

<mosaic_0001>
module attributes {stable_mosaic.version = 11 : i64} {
  func.func @_conv_in_lrelu_kernel(%arg0: i32, %arg1: memref<1x9x128xf32, #tpu.memory_space<vmem>>, %arg2: memref<4x9xf32, #tpu.memory_space<vmem>>, %arg3: memref<1x4x128xf32, #tpu.memory_space<vmem>>) attributes {dimension_semantics = [#tpu.dimension_semantics<parallel>], iteration_bounds = array<i64: 1>, scalar_prefetch = 0 : i64, scratch_operands = 0 : i64, tpu.core_type = #tpu.core_type<tc>, window_params = [{transform_indices = @transform_0, window_bounds = array<i64: 1, 9, 128>}, {pipeline_mode = #tpu.pipeline_mode<synchronous>, transform_indices = @transform_1, window_bounds = array<i64: 4, 9>}, {transform_indices = @transform_2, window_bounds = array<i64: 1, 4, 128>}]} {
    %c0 = arith.constant 0 : index
    %c0_0 = arith.constant 0 : index
    %c0_1 = arith.constant 0 : index
    %0 = vector.load %arg1[%c0, %c0_0, %c0_1] : memref<1x9x128xf32, #tpu.memory_space<vmem>>, vector<1x9x128xf32>
    %1 = vector.shape_cast %0 : vector<1x9x128xf32> to vector<9x128xf32>
    %c0_2 = arith.constant 0 : index
    %c0_3 = arith.constant 0 : index
    %2 = vector.load %arg2[%c0_2, %c0_3] : memref<4x9xf32, #tpu.memory_space<vmem>>, vector<4x9xf32>
    %cst = arith.constant dense<0.000000e+00> : vector<4x128xf32>
    %3 = tpu.matmul %2, %1, %cst {dimension_numbers = #tpu.dot_dimension_numbers<[1], [0], [0], [1], [0, 0, 1, 1], [], []>} : vector<4x9xf32>, vector<9x128xf32>, vector<4x128xf32> -> vector<4x128xf32>
    %4 = vector.extract_strided_slice %3 {offsets = [0, 0], sizes = [4, 64], strides = [1, 1]} : vector<4x128xf32> to vector<4x64xf32>
    %cst_4 = arith.constant dense<0.000000e+00> : vector<4xf32>
    %5 = vector.multi_reduction <add>, %4, %cst_4 [1] : vector<4x64xf32> to vector<4xf32>
    %6 = vector.shape_cast %5 : vector<4xf32> to vector<4x1xf32>
    %cst_5 = arith.constant 0.000000e+00 : f32
    %7 = vector.broadcast %cst_5 : f32 to vector<4x1xf32>
    %8 = arith.addf %7, %6 : vector<4x1xf32>
    %9 = arith.mulf %4, %4 : vector<4x64xf32>
    %cst_6 = arith.constant dense<0.000000e+00> : vector<4xf32>
    %10 = vector.multi_reduction <add>, %9, %cst_6 [1] : vector<4x64xf32> to vector<4xf32>
    %11 = vector.shape_cast %10 : vector<4xf32> to vector<4x1xf32>
    %cst_7 = arith.constant 0.000000e+00 : f32
    %12 = vector.broadcast %cst_7 : f32 to vector<4x1xf32>
    %13 = arith.addf %12, %11 : vector<4x1xf32>
    %cst_8 = arith.constant 1.562500e-02 : f32
    %14 = vector.broadcast %cst_8 : f32 to vector<4x1xf32>
    %15 = arith.mulf %8, %14 : vector<4x1xf32>
    %cst_9 = arith.constant 1.562500e-02 : f32
    %16 = vector.broadcast %cst_9 : f32 to vector<4x1xf32>
    %17 = arith.mulf %13, %16 : vector<4x1xf32>
    %18 = arith.mulf %15, %15 : vector<4x1xf32>
    %19 = arith.subf %17, %18 : vector<4x1xf32>
    %cst_10 = arith.constant 0.000000e+00 : f32
    %20 = vector.broadcast %cst_10 : f32 to vector<4x1xf32>
    %21 = arith.maximumf %19, %20 : vector<4x1xf32>
    %cst_11 = arith.constant 9.99999974E-6 : f32
    %22 = vector.broadcast %cst_11 : f32 to vector<4x1xf32>
    %23 = arith.addf %21, %22 : vector<4x1xf32>
    %24 = math.rsqrt %23 : vector<4x1xf32>
    %25 = vector.broadcast %15 : vector<4x1xf32> to vector<4x64xf32>
    %26 = arith.subf %4, %25 : vector<4x64xf32>
    %27 = vector.broadcast %24 : vector<4x1xf32> to vector<4x64xf32>
    %28 = arith.mulf %26, %27 : vector<4x64xf32>
    %cst_12 = arith.constant 0.00999999977 : f32
    %29 = vector.broadcast %cst_12 : f32 to vector<4x64xf32>
    %30 = arith.mulf %29, %28 : vector<4x64xf32>
    %31 = arith.maximumf %28, %30 : vector<4x64xf32>
    %32 = vector.extract_strided_slice %3 {offsets = [0, 64], sizes = [4, 64], strides = [1, 1]} : vector<4x128xf32> to vector<4x64xf32>
    %cst_13 = arith.constant dense<0.000000e+00> : vector<4xf32>
    %33 = vector.multi_reduction <add>, %32, %cst_13 [1] : vector<4x64xf32> to vector<4xf32>
    %34 = vector.shape_cast %33 : vector<4xf32> to vector<4x1xf32>
    %cst_14 = arith.constant 0.000000e+00 : f32
    %35 = vector.broadcast %cst_14 : f32 to vector<4x1xf32>
    %36 = arith.addf %35, %34 : vector<4x1xf32>
    %37 = arith.mulf %32, %32 : vector<4x64xf32>
    %cst_15 = arith.constant dense<0.000000e+00> : vector<4xf32>
    %38 = vector.multi_reduction <add>, %37, %cst_15 [1] : vector<4x64xf32> to vector<4xf32>
    %39 = vector.shape_cast %38 : vector<4xf32> to vector<4x1xf32>
    %cst_16 = arith.constant 0.000000e+00 : f32
    %40 = vector.broadcast %cst_16 : f32 to vector<4x1xf32>
    %41 = arith.addf %40, %39 : vector<4x1xf32>
    %cst_17 = arith.constant 1.562500e-02 : f32
    %42 = vector.broadcast %cst_17 : f32 to vector<4x1xf32>
    %43 = arith.mulf %36, %42 : vector<4x1xf32>
    %cst_18 = arith.constant 1.562500e-02 : f32
    %44 = vector.broadcast %cst_18 : f32 to vector<4x1xf32>
    %45 = arith.mulf %41, %44 : vector<4x1xf32>
    %46 = arith.mulf %43, %43 : vector<4x1xf32>
    %47 = arith.subf %45, %46 : vector<4x1xf32>
    %cst_19 = arith.constant 0.000000e+00 : f32
    %48 = vector.broadcast %cst_19 : f32 to vector<4x1xf32>
    %49 = arith.maximumf %47, %48 : vector<4x1xf32>
    %cst_20 = arith.constant 9.99999974E-6 : f32
    %50 = vector.broadcast %cst_20 : f32 to vector<4x1xf32>
    %51 = arith.addf %49, %50 : vector<4x1xf32>
    %52 = math.rsqrt %51 : vector<4x1xf32>
    %53 = vector.broadcast %43 : vector<4x1xf32> to vector<4x64xf32>
    %54 = arith.subf %32, %53 : vector<4x64xf32>
    %55 = vector.broadcast %52 : vector<4x1xf32> to vector<4x64xf32>
    %56 = arith.mulf %54, %55 : vector<4x64xf32>
    %cst_21 = arith.constant 0.00999999977 : f32
    %57 = vector.broadcast %cst_21 : f32 to vector<4x64xf32>
    %58 = arith.mulf %57, %56 : vector<4x64xf32>
    %59 = arith.maximumf %56, %58 : vector<4x64xf32>
    %60 = tpu.concatenate %31, %59 in 1 : vector<4x64xf32>, vector<4x64xf32> -> vector<4x128xf32>
    %c0_22 = arith.constant 0 : index
    %c0_23 = arith.constant 0 : index
    %c0_24 = arith.constant 0 : index
    %61 = vector.load %arg3[%c0_22, %c0_23, %c0_24] : memref<1x4x128xf32, #tpu.memory_space<vmem>>, vector<1x4x128xf32>
    %62 = vector.shape_cast %61 : vector<1x4x128xf32> to vector<4x128xf32>
    %63 = vector.shape_cast %60 : vector<4x128xf32> to vector<1x4x128xf32>
    tpu.vector_store %arg3[%c0_22, %c0_23, %c0_24], %63 {strides = array<i32>} : memref<1x4x128xf32, #tpu.memory_space<vmem>>, vector<1x4x128xf32>,
    return
  }
  func.func @transform_0(%arg0: i32) -> (i32, i32, i32) {
    %c0_i32 = arith.constant 0 : i32
    %c0_i32_0 = arith.constant 0 : i32
    %c0_i32_1 = arith.constant 0 : i32
    return %arg0, %c0_i32, %c0_i32_0 : i32, i32, i32
  }
  func.func @transform_1(%arg0: i32) -> (i32, i32) {
    %c0_i32 = arith.constant 0 : i32
    %c0_i32_0 = arith.constant 0 : i32
    %c0_i32_1 = arith.constant 0 : i32
    return %c0_i32, %c0_i32_0 : i32, i32
  }
  func.func @transform_2(%arg0: i32) -> (i32, i32, i32) {
    %c0_i32 = arith.constant 0 : i32
    %c0_i32_0 = arith.constant 0 : i32
    %c0_i32_1 = arith.constant 0 : i32
    return %arg0, %c0_i32, %c0_i32_0 : i32, i32, i32
  }
}

</mosaic_0001>

<llo_original>
// kernel: tpu_custom_call.1
$region0: #{tpu_custom_call.1}
  #allocation0 [shape = 'u32[]', space=smem, size = 0x4, offset = 0x4, fixed_abs, tag = 'smem constant byte address 0x4 - core index']
  #allocation1 [shape = 'u32[144,128]{1,0:T(1,128)}', space=vmem, size = 0x12000, scoped, tag = 'internal scratch']
  %s0 = inlined_call_operand.vmem [shape: f32[1,9,128], index: 0, kind: input, shape index: {}]
  %s1 = inlined_call_operand.vmem [shape: f32[4,9], index: 1, kind: input, shape index: {}]
  %s2 = inlined_call_operand.hbm [shape: f32[1,4,128], index: 2, kind: output, shape index: {}]
  %s3 = sld [smem:[#allocation0]]
  $region18: #{tpu_custom_call.1} parent=0
    _
  %s5 = ssub.s32 1, %s3
  %s6 = scalar_select 0, %s5, %s3
  $region1: #{tpu_custom_call.1} parent=0
    #allocation2 [shape = 'u8[2048]{0}', space=vmem, size = 0x800, scoped, tag = 'output window, operand 0, single buffered']
    #allocation3 [shape = 's32[1]{0}', space=sflag, size = 0x4, scoped, tag = 'scoped memory for tpu_custom_call.1']
    %7 = vsyncpa [#allocation3], 0
    // Predicated region
    $region2: #{tpu_custom_call.1} parent=1 // pred_check
      _
    $region3: #{tpu_custom_call.1} parent=1 // pred_check_branch
      %9 = sbr.rel (0) target = $region5
    $region4: #{tpu_custom_call.1} parent=1 // pred_region
      _
    $region5: #{tpu_custom_call.1} parent=1 // pred_fallthru
      _
    // Predicated region
    $region6: #{tpu_custom_call.1} parent=1 // pred_check
      _
    $region7: #{tpu_custom_call.1} parent=1 // pred_check_branch
      %11 = sbr.rel (0) target = $region9
    $region8: #{tpu_custom_call.1} parent=1 // pred_region
      _
    $region9: #{tpu_custom_call.1} parent=1 // pred_fallthru
      _
    %v12 = vld [vmem:[%s0] sm:$0xff]
    %v13 = vld [vmem:[%s0 + $0x8] sm:$0x1]
    %v14 = vld [vmem:[%s1] sm:$0xf]
    %vm15 = vcmask 72704
    %v17 = vsel %vm15, %v14, 0
    %vm19 = vcmask 1040384
    %v21 = vsel %vm19, %v13, 0
    %23 = vmatprep.subr.mxu0 0.0
    %24 = vmatpush1.msra.mxu0 %v12
    %25 = vmatprep.subr.mxu0 0.0
    %26 = vmatpush1.msra.mxu0 %v21
    %27 = vmatprep.subr.mxu0 0.0
    %28 = vmatpush1.msra.mxu0 0.0
    %29 = vmatprep.subr.mxu0 0.0
    %30 = vmatpush1.msra.mxu0 0.0
    %31 = vmatprep.subr.mxu0 0.0
    %32 = vmatpush1.msra.mxu0 0.0
    %33 = vmatprep.subr.mxu0 0.0
    %34 = vmatpush1.msra.mxu0 0.0
    %35 = vmatprep.subr.mxu0 0.0
    %36 = vmatpush1.msra.mxu0 0.0
    %37 = vmatprep.subr.mxu0 0.0
    %38 = vmatpush1.msra.mxu0 0.0
    %39 = vmatprep.subr.mxu0 0.0
    %40 = vmatpush1.msra.mxu0 0.0
    %41 = vmatprep.subr.mxu0 0.0
    %42 = vmatpush1.msra.mxu0 0.0
    %43 = vmatprep.subr.mxu0 0.0
    %44 = vmatpush1.msra.mxu0 0.0
    %45 = vmatprep.subr.mxu0 0.0
    %46 = vmatpush1.msra.mxu0 0.0
    %47 = vmatprep.subr.mxu0 0.0
    %48 = vmatpush1.msra.mxu0 0.0
    %49 = vmatprep.subr.mxu0 0.0
    %50 = vmatpush1.msra.mxu0 0.0
    %51 = vmatprep.subr.mxu0 0.0
    %52 = vmatpush1.msra.mxu0 0.0
    %53 = vmatprep.subr.mxu0 0.0
    %54 = vmatpush1.msra.mxu0 0.0
    %55 = vmatprep.subr.mxu0 0.0
    %56 = vmatpush1.msra.mxu0 0.0
    %57 = vmatprep.subr.mxu0 0.0
    %58 = vmatpush1.msra.mxu0 0.0
    %59 = vmatprep.subr.mxu0 0.0
    %60 = vmatpush1.msra.mxu0 0.0
    %61 = vmatprep.subr.mxu0 0.0
    %62 = vmatpush1.msra.mxu0 0.0
    %63 = vmatprep.subr.mxu0 0.0
    %64 = vmatpush1.msra.mxu0 0.0
    %65 = vmatprep.subr.mxu0 0.0
    %66 = vmatpush1.msra.mxu0 0.0
    %67 = vmatprep.subr.mxu0 0.0
    %68 = vmatpush1.msra.mxu0 0.0
    %69 = vmatprep.subr.mxu0 0.0
    %70 = vmatpush1.msra.mxu0 0.0
    %71 = vmatprep.subr.mxu0 0.0
    %72 = vmatpush1.msra.mxu0 0.0
    %73 = vmatprep.subr.mxu0 0.0
    %74 = vmatpush1.msra.mxu0 0.0
    %75 = vmatprep.subr.mxu0 0.0
    %76 = vmatpush1.msra.mxu0 0.0
    %77 = vmatprep.subr.mxu0 0.0
    %78 = vmatpush1.msra.mxu0 0.0
    %79 = vmatprep.subr.mxu0 0.0
    %80 = vmatpush1.msra.mxu0 0.0
    %81 = vmatprep.subr.mxu0 0.0
    %82 = vmatpush1.msra.mxu0 0.0
    %83 = vmatprep.subr.mxu0 0.0
    %84 = vmatpush1.msra.mxu0 0.0
    %85 = vmatprep.subr.mxu0 0.0
    %86 = vmatpush1.msra.mxu0 0.0
    %87 = vmatprep.mubr.f32.mxu0 0.0
    %88 = vmatmul.mubr.f32.gmra.mrb[0].mxu0 %v17
    %v89 = vpop.f32.mrb[0].mxu0
    %v90 = vadd.f32 0.0, %v89
    %v91 = vpop.f32.mrb[0].mxu0
    %92 = vdwg.mxu0
    %vm93 = vcmask 519168
    %v94 = vsel %vm93, %v90, 0.0
    %95 = vadd.xlane.f32.xlu0 %v94
    %v96 = vpop.xlane.xlu0 %95
    %v97 = vadd.f32 %v96, 0.0
    %v98 = vmul.f32 %v90, %v90
    %v99 = vsel %vm93, %v98, 0.0
    %100 = vadd.xlane.f32.xlu0 %v99
    %v101 = vpop.xlane.xlu0 %100
    %v102 = vadd.f32 %v101, 0.0
    %v103 = vmul.f32 %v97, 0.015625
    %v104 = vmul.f32 %v102, 0.015625
    %v105 = vmul.f32 %v103, %v103
    %v106 = vsub.f32 %v104, %v105
    %v107 = vmax.f32 %v106, 0.0
    %v108 = vadd.f32 %v107, 1e-05
    %v109 = vrsqrt.pop %v108
    %v110 = vsub.f32 %v90, %v103
    %v111 = vmul.f32 %v110, %v109
    %v112 = vmul.f32 %v111, 0.01
    %v113 = vmax.f32 %v111, %v112
    %115 = vrot.lane.b32.xlu0 %v90, 64
    %v116 = vpop.permute.xlu0 %115
    %v118 = vsel %vm93, %v116, 0.0
    %119 = vadd.xlane.f32.xlu0 %v118
    %v120 = vpop.xlane.xlu0 %119
    %v121 = vadd.f32 %v120, 0.0
    %123 = vrot.lane.b32.xlu0 %v98, 64
    %v124 = vpop.permute.xlu0 %123
    %v126 = vsel %vm93, %v124, 0.0
    %127 = vadd.xlane.f32.xlu0 %v126
    %v128 = vpop.xlane.xlu0 %127
    %v129 = vadd.f32 %v128, 0.0
    %v130 = vmul.f32 %v121, 0.015625
    %v131 = vmul.f32 %v129, 0.015625
    %v132 = vmul.f32 %v130, %v130
    %v133 = vsub.f32 %v131, %v132
    %v134 = vmax.f32 %v133, 0.0
    %v135 = vadd.f32 %v134, 1e-05
    %v136 = vrsqrt.pop %v135
    %v137 = vsub.f32 %v90, %v130
    %v138 = vmul.f32 %v137, %v136
    %v139 = vmul.f32 %v138, 0.01
    %v140 = vmax.f32 %v138, %v139
    %vm141 = vcmask 523264
    %v142 = vsel %vm141, %v113, %v140
    %143 = vst [vmem:[#allocation2] sm:$0xf] %v142
    // Predicated region
    $region10: #{tpu_custom_call.1} parent=1 // pred_check
      _
    $region11: #{tpu_custom_call.1} parent=1 // pred_check_branch
      %145 = sbr.rel (0) target = $region13
    $region12: #{tpu_custom_call.1} parent=1 // pred_region
      %s147 = ssub.s32 64, 64
      %148 = vsyncadd [#allocation3], %s147
      %s150 = sshll.u32 [#allocation2], 4
      %s151 = int_to_ptr.vmem [resolvable:$true] %s150
      %153 = dma.vmem_to_hbm [thread:$0]  %s151, 64, %s2, [#allocation3]
    $region13: #{tpu_custom_call.1} parent=1 // pred_fallthru
      _
    // Predicated region
    $region14: #{tpu_custom_call.1} parent=1 // pred_check
      _
    $region15: #{tpu_custom_call.1} parent=1 // pred_check_branch
      %155 = sbr.rel (0) target = $region17
    $region16: #{tpu_custom_call.1} parent=1 // pred_region
      %156 = dma.done [#allocation3], 64
    $region17: #{tpu_custom_call.1} parent=1 // pred_fallthru
      _
    %157 = vsyncpa [#allocation3], 1

</llo_original>
